<compile_context>
chip_gen: v7x
topology: tpu7x:2x2x1
jax: 0.10.0
libtpu: 0.0.40
codegen_flags: <defaults>
</compile_context>

<pallas_src>
import jax
import jax.numpy as jnp
from jax.experimental import pallas as pl
from jax.experimental.pallas import tpu as pltpu

_LANES = 128
_MAX_BLOCK_ROWS = 8192        # 8192 x 128 x f32 = 4 MiB per input per buffer
_CHUNK_ROWS = 1024            # in-kernel compute chunk (bounds temporaries)
_VMEM_LIMIT_BYTES = 32 * 1024 * 1024


def _make_msle_kernel(block_rows: int, steps_per_split: int, last_block: int,
                      tail_rows: int, inv_n: float, has_dup: bool):
    need_tail_mask = tail_rows < block_rows
    chunk_starts = tuple(range(0, block_rows, _CHUNK_ROWS))

    def _chunk_sq(pred_ref, label_ref, r0, cr):
        p = pred_ref[r0:r0 + cr, :].astype(jnp.float32)
        t = label_ref[r0:r0 + cr, :].astype(jnp.float32)
        d = jnp.log(p + 1.0) - jnp.log(t + 1.0)   # matches torch.log(x + 1)
        return d * d

    def _accumulate(acc_ref, sq, cr):
        if cr % 8 == 0:
            # Layout-preserving sublane split -> pure tree of vreg adds (VPU).
            acc_ref[...] += jnp.sum(sq.reshape(cr // 8, 8, _LANES), axis=0)
        else:
            # Tiny/odd chunk fallback: single sublane reduce into row 0.
            acc_ref[0:1, :] = acc_ref[0:1, :] + jnp.sum(sq, axis=0,
                                                        keepdims=True)

    def _full_block(pred_ref, label_ref, acc_ref):
        for r0 in chunk_starts:
            cr = min(_CHUNK_ROWS, block_rows - r0)
            _accumulate(acc_ref, _chunk_sq(pred_ref, label_ref, r0, cr), cr)

    def _tail_block(pred_ref, label_ref, acc_ref):
        for r0 in chunk_starts:
            if r0 >= tail_rows:
                break                       # rest of the block is invalid rows
            cr = min(_CHUNK_ROWS, block_rows - r0)
            sq = _chunk_sq(pred_ref, label_ref, r0, cr)
            if r0 + cr > tail_rows:
                # Only the straddling chunk pays for the mask.
                row = jax.lax.broadcasted_iota(jnp.int32, (cr, _LANES), 0) + r0
                sq = jnp.where(row < tail_rows, sq, 0.0)
            _accumulate(acc_ref, sq, cr)

    def kernel(pred_ref, label_ref, out_ref, acc_ref):
        c = pl.program_id(0)   # megacore split ("parallel")
        j = pl.program_id(1)   # streaming reduction ("arbitrary")
        blk = c * steps_per_split + j

        @pl.when(j == 0)
        def _init():
            acc_ref[...] = jnp.zeros_like(acc_ref)

        if not need_tail_mask and not has_dup:
            _full_block(pred_ref, label_ref, acc_ref)
        elif not need_tail_mask:
            @pl.when(blk <= last_block)
            def _():
                _full_block(pred_ref, label_ref, acc_ref)
        else:
            @pl.when(blk < last_block)
            def _():
                _full_block(pred_ref, label_ref, acc_ref)

            @pl.when(blk == last_block)
            def _():
                _tail_block(pred_ref, label_ref, acc_ref)
            # blk > last_block (duplicated clamped block): compute skipped.

        @pl.when(j == pl.num_programs(1) - 1)
        def _finalize():
            out_ref[0, 0] = jnp.sum(acc_ref[...]) * inv_n

    return kernel


def msle_loss(pred: jax.Array, label: jax.Array) -> jax.Array:
    """Pallas TPU implementation of MSELoss()(log(pred+1), log(label+1))."""
    assert pred.shape == label.shape, "pred/label must have identical shapes"
    n = pred.size
    assert n > 0

    p_flat = jnp.ravel(pred)
    t_flat = jnp.ravel(label)

    # Lane-align to a (rows, 128) slab; pad only when n is not a multiple of
    # 128 (zero padding on BOTH operands contributes exactly 0 to the sum).
    padded = pl.cdiv(n, _LANES) * _LANES
    if padded != n:
        # TODO(synk): handle the ragged lane tail in-kernel (element mask on
        # the last block) to avoid this full-array pad copy for unaligned n.
        p_flat = jnp.pad(p_flat, (0, padded - n))
        t_flat = jnp.pad(t_flat, (0, padded - n))
    rows = padded // _LANES
    p2 = p_flat.reshape(rows, _LANES)
    t2 = t_flat.reshape(rows, _LANES)

    # Biggest row-block up to _MAX_BLOCK_ROWS; when rows < max the block is
    # the full first dim (always legal).
    block_rows = min(_MAX_BLOCK_ROWS, rows)
    steps_total = pl.cdiv(rows, block_rows)

    # Split across TensorCores (real parallelism on v7x megacore; a cheap
    # serial loop on single-core v5e/v6e).
    splits = 2 if steps_total >= 2 else 1
    steps_per_split = pl.cdiv(steps_total, splits)
    last_block = steps_total - 1
    tail_rows = rows - last_block * block_rows
    has_dup = splits * steps_per_split > steps_total

    if has_dup:
        def in_index_map(c, j):
            # Never DMA a fully out-of-range block; the duplicated block's
            # compute is skipped inside the kernel.
            return (jnp.minimum(c * steps_per_split + j, last_block), 0)
    else:
        def in_index_map(c, j):
            return (c * steps_per_split + j, 0)

    in_spec = pl.BlockSpec((block_rows, _LANES), in_index_map)

    partials = pl.pallas_call(
        _make_msle_kernel(block_rows, steps_per_split, last_block, tail_rows,
                          1.0 / float(n), has_dup),
        out_shape=jax.ShapeDtypeStruct((splits, 1), jnp.float32),
        grid_spec=pltpu.PrefetchScalarGridSpec(
            num_scalar_prefetch=0,
            grid=(splits, steps_per_split),
            in_specs=[in_spec, in_spec],
            out_specs=pl.BlockSpec((1, 1), lambda c, j: (c, 0),
                                   memory_space=pltpu.SMEM),
            scratch_shapes=[pltpu.VMEM((8, _LANES), jnp.float32)],
        ),
        compiler_params=pltpu.CompilerParams(
            dimension_semantics=("parallel", "arbitrary"),
            vmem_limit_bytes=_VMEM_LIMIT_BYTES,
        ),
    )(p2, t2)

    # Each per-split partial already carries the 1/n factor.
    return jnp.sum(partials)


if __name__ == "__main__":
    key = jax.random.PRNGKey(0)
    k1, k2 = jax.random.split(key)
    # NCHW-like shapes (batch=2, channels=4, spatial=16x16); values kept > 0
    # so log(x + 1) is well defined, matching typical MSLE usage.
    pred = jax.random.uniform(k1, (2, 4, 16, 16), dtype=jnp.float32) * 10.0
    label = jax.random.uniform(k2, (2, 4, 16, 16), dtype=jnp.float32) * 10.0

    loss = msle_loss(pred, label)
    jax.block_until_ready(loss)

    # Reference check in plain JAX (literal torch semantics: log(x + 1)).
    ref = jnp.mean((jnp.log(pred + 1.0) - jnp.log(label + 1.0)) ** 2)
    assert jnp.allclose(loss, ref, rtol=1e-5, atol=1e-6), (loss, ref)

    print("KERNEL_OK")
</pallas_src>

<mosaic_0001>
module attributes {stable_mosaic.version = 11 : i64} {
  func.func @kernel(%arg0: i32, %arg1: i32, %arg2: memref<16x128xf32, #tpu.memory_space<vmem>>, %arg3: memref<16x128xf32, #tpu.memory_space<vmem>>, %arg4: memref<1x1xf32, #tpu.memory_space<smem>>, %arg5: memref<8x128xf32, #tpu.memory_space<vmem>>) attributes {dimension_semantics = [#tpu.dimension_semantics<parallel>, #tpu.dimension_semantics<arbitrary>], iteration_bounds = array<i64: 1, 1>, scalar_prefetch = 0 : i64, scratch_operands = 1 : i64, tpu.core_type = #tpu.core_type<tc>, window_params = [{transform_indices = @transform_0, window_bounds = array<i64: 16, 128>}, {transform_indices = @transform_1, window_bounds = array<i64: 16, 128>}, {transform_indices = @transform_2, window_bounds = array<i64: 1, 1>}]} {
    %c0_i32 = arith.constant 0 : i32
    %0 = arith.cmpi eq, %arg1, %c0_i32 : i32
    %1 = arith.extui %0 : i1 to i32
    %c0_i32_0 = arith.constant 0 : i32
    %2 = arith.cmpi ne, %1, %c0_i32_0 : i32
    scf.if %2 {
      %cst_12 = arith.constant 0.000000e+00 : f32
      %21 = vector.broadcast %cst_12 : f32 to vector<8x128xf32>
      %c0_13 = arith.constant 0 : index
      %c0_14 = arith.constant 0 : index
      %22 = vector.load %arg5[%c0_13, %c0_14] : memref<8x128xf32, #tpu.memory_space<vmem>>, vector<8x128xf32>
      tpu.vector_store %arg5[%c0_13, %c0_14], %21 {strides = array<i32>} : memref<8x128xf32, #tpu.memory_space<vmem>>, vector<8x128xf32>,
    } else {
    }
    %c0 = arith.constant 0 : index
    %c0_1 = arith.constant 0 : index
    %3 = vector.load %arg2[%c0, %c0_1] : memref<16x128xf32, #tpu.memory_space<vmem>>, vector<16x128xf32>
    %c0_2 = arith.constant 0 : index
    %c0_3 = arith.constant 0 : index
    %4 = vector.load %arg3[%c0_2, %c0_3] : memref<16x128xf32, #tpu.memory_space<vmem>>, vector<16x128xf32>
    %cst = arith.constant 1.000000e+00 : f32
    %5 = vector.broadcast %cst : f32 to vector<16x128xf32>
    %6 = arith.addf %3, %5 : vector<16x128xf32>
    %7 = math.log %6 : vector<16x128xf32>
    %cst_4 = arith.constant 1.000000e+00 : f32
    %8 = vector.broadcast %cst_4 : f32 to vector<16x128xf32>
    %9 = arith.addf %4, %8 : vector<16x128xf32>
    %10 = math.log %9 : vector<16x128xf32>
    %11 = arith.subf %7, %10 : vector<16x128xf32>
    %12 = arith.mulf %11, %11 : vector<16x128xf32>
    %c0_5 = arith.constant 0 : index
    %c0_6 = arith.constant 0 : index
    %13 = vector.load %arg5[%c0_5, %c0_6] : memref<8x128xf32, #tpu.memory_space<vmem>>, vector<8x128xf32>
    %14 = vector.shape_cast %12 : vector<16x128xf32> to vector<2x8x128xf32>
    %cst_7 = arith.constant dense<0.000000e+00> : vector<8x128xf32>
    %15 = vector.multi_reduction <add>, %14, %cst_7 [0] : vector<2x8x128xf32> to vector<8x128xf32>
    %16 = arith.addf %13, %15 : vector<8x128xf32>
    %c0_8 = arith.constant 0 : index
    %c0_9 = arith.constant 0 : index
    %17 = vector.load %arg5[%c0_8, %c0_9] : memref<8x128xf32, #tpu.memory_space<vmem>>, vector<8x128xf32>
    tpu.vector_store %arg5[%c0_8, %c0_9], %16 {strides = array<i32>} : memref<8x128xf32, #tpu.memory_space<vmem>>, vector<8x128xf32>,
    %c0_i32_10 = arith.constant 0 : i32
    %18 = arith.cmpi eq, %arg1, %c0_i32_10 : i32
    %19 = arith.extui %18 : i1 to i32
    %c0_i32_11 = arith.constant 0 : i32
    %20 = arith.cmpi ne, %19, %c0_i32_11 : i32
    scf.if %20 {
      %c0_12 = arith.constant 0 : index
      %c0_13 = arith.constant 0 : index
      %21 = vector.load %arg5[%c0_12, %c0_13] : memref<8x128xf32, #tpu.memory_space<vmem>>, vector<8x128xf32>
      %22 = vector.shape_cast %21 : vector<8x128xf32> to vector<1x8x128xf32>
      %cst_14 = arith.constant dense<0.000000e+00> : vector<1xf32>
      %23 = vector.multi_reduction <add>, %22, %cst_14 [1, 2] : vector<1x8x128xf32> to vector<1xf32>
      %24 = vector.shape_cast %23 : vector<1xf32> to vector<1x1x1xf32>
      %25 = vector.extract %24[0, 0, 0] : f32 from vector<1x1x1xf32>
      %cst_15 = arith.constant 4.8828125E-4 : f32
      %26 = arith.mulf %25, %cst_15 : f32
      %c0_16 = arith.constant 0 : index
      %c0_17 = arith.constant 0 : index
      %27 = memref.load %arg4[%c0_16, %c0_17] : memref<1x1xf32, #tpu.memory_space<smem>>
      memref.store %26, %arg4[%c0_16, %c0_17] : memref<1x1xf32, #tpu.memory_space<smem>>
    } else {
    }
    return
  }
  func.func @transform_0(%arg0: i32, %arg1: i32) -> (i32, i32) {
    %c1_i32 = arith.constant 1 : i32
    %0 = arith.muli %arg0, %c1_i32 : i32
    %1 = arith.addi %0, %arg1 : i32
    %c0_i32 = arith.constant 0 : i32
    %c0_i32_0 = arith.constant 0 : i32
    return %1, %c0_i32 : i32, i32
  }
  func.func @transform_1(%arg0: i32, %arg1: i32) -> (i32, i32) {
    %c1_i32 = arith.constant 1 : i32
    %0 = arith.muli %arg0, %c1_i32 : i32
    %1 = arith.addi %0, %arg1 : i32
    %c0_i32 = arith.constant 0 : i32
    %c0_i32_0 = arith.constant 0 : i32
    return %1, %c0_i32 : i32, i32
  }
  func.func @transform_2(%arg0: i32, %arg1: i32) -> (i32, i32) {
    %c0_i32 = arith.constant 0 : i32
    %c0_i32_0 = arith.constant 0 : i32
    return %arg0, %c0_i32 : i32, i32
  }
}

</mosaic_0001>

<llo_original>
// kernel: tpu_custom_call.1
$region0: #{tpu_custom_call.1}
  #allocation0 [shape = 'u32[]', space=smem, size = 0x4, offset = 0x4, fixed_abs, tag = 'smem constant byte address 0x4 - core index']
  #allocation1 [shape = 'u32[144,128]{1,0:T(1,128)}', space=vmem, size = 0x12000, scoped, tag = 'internal scratch']
  #allocation2 [shape = 'f32[8,128]{1,0:T(8,128)}', space=vmem, size = 0x1000, scoped, tag = 'scratch operand']
  %s0 = inlined_call_operand.hbm [shape: f32[16,128], index: 0, kind: input, shape index: {}]
  %s1 = inlined_call_operand.hbm [shape: f32[16,128], index: 1, kind: input, shape index: {}]
  %s2 = inlined_call_operand.hbm [shape: f32[1,1], index: 2, kind: output, shape index: {}]
  %s3 = sld [smem:[#allocation0]]
  $region34: #{tpu_custom_call.1} parent=0
    _
  %s5 = ssub.s32 1, %s3
  %s6 = scalar_select 0, %s5, %s3
  $region1: #{tpu_custom_call.1} parent=0
    #allocation3 [shape = 'u8[8192]{0}', space=vmem, size = 0x2000, scoped, tag = 'input window, operand 0, single buffered']
    #allocation4 [shape = 's32[1]{0}', space=sflag, size = 0x4, scoped, tag = 'scoped memory for tpu_custom_call.1']
    #allocation5 [shape = 's32[1]{0}', space=sflag, size = 0x4, scoped, tag = 'scoped memory for tpu_custom_call.1']
    #allocation6 [shape = 'u8[8192]{0}', space=vmem, size = 0x2000, scoped, tag = 'input window, operand 1, single buffered']
    #allocation7 [shape = 's32[1]{0}', space=sflag, size = 0x4, scoped, tag = 'scoped memory for tpu_custom_call.1']
    #allocation8 [shape = 'u8[512]{0}', space=smem, size = 0x200, scoped, tag = 'output window, operand 0, single buffered']
    %7 = vsyncpa [#allocation4], 0
    %8 = vsyncpa [#allocation7], 0
    %9 = vsyncpa [#allocation5], 0
    // Predicated region
    $region2: #{tpu_custom_call.1} parent=1 // pred_check
      _
    $region3: #{tpu_custom_call.1} parent=1 // pred_check_branch
      %11 = sbr.rel (0) target = $region5
    $region4: #{tpu_custom_call.1} parent=1 // pred_region
      %s12 = sadd.s32 0, 0
      %s13 = smul.u32 2, %s12
      %s15 = ssub.s32 256, 256
      %16 = vsyncadd [#allocation4], %s15
      %s17 = smul.addr %s13, 128
      %s18 = scalar_lea.hbm %s0, %s17
      %s19 = sshll.u32 [#allocation3], 4
      %s20 = int_to_ptr.vmem [resolvable:$true] %s19
      %25 = dma.hbm_to_vmem [thread:$0]  %s18, 256, %s20, [#allocation4], 128, 128, 8
    $region5: #{tpu_custom_call.1} parent=1 // pred_fallthru
      _
    // Predicated region
    $region6: #{tpu_custom_call.1} parent=1 // pred_check
      _
    $region7: #{tpu_custom_call.1} parent=1 // pred_check_branch
      %27 = sbr.rel (0) target = $region9
    $region8: #{tpu_custom_call.1} parent=1 // pred_region
      %s28 = sadd.s32 0, 0
      %s29 = smul.u32 2, %s28
      %s31 = ssub.s32 256, 256
      %32 = vsyncadd [#allocation7], %s31
      %s33 = smul.addr %s29, 128
      %s34 = scalar_lea.hbm %s1, %s33
      %s35 = sshll.u32 [#allocation6], 4
      %s36 = int_to_ptr.vmem [resolvable:$true] %s35
      %41 = dma.hbm_to_vmem [thread:$0]  %s34, 256, %s36, [#allocation7], 128, 128, 8
    $region9: #{tpu_custom_call.1} parent=1 // pred_fallthru
      _
    // Predicated region
    $region10: #{tpu_custom_call.1} parent=1 // pred_check
      _
    $region11: #{tpu_custom_call.1} parent=1 // pred_check_branch
      %43 = sbr.rel (0) target = $region13
    $region12: #{tpu_custom_call.1} parent=1 // pred_region
      %44 = dma.done [#allocation4], 256
    $region13: #{tpu_custom_call.1} parent=1 // pred_fallthru
      _
    // Predicated region
    $region14: #{tpu_custom_call.1} parent=1 // pred_check
      _
    $region15: #{tpu_custom_call.1} parent=1 // pred_check_branch
      %46 = sbr.rel (0) target = $region17
    $region16: #{tpu_custom_call.1} parent=1 // pred_region
      %47 = dma.done [#allocation7], 256
    $region17: #{tpu_custom_call.1} parent=1 // pred_fallthru
      _
    %s48 = sadd.s32 0, 0
    %s49 = smul.u32 2, %s48
    %s50 = sadd.s32 0, 0
    %s51 = smul.u32 2, %s50
    %p52 = scmp.eq.s32.totalorder 0, 0
    // Predicated region
    $region18: #{tpu_custom_call.1} parent=1 // pred_check
      %p53 = pneg %p52
    $region19: #{tpu_custom_call.1} parent=1 // pred_check_branch
      %55 = sbr.rel (%p53) target = $region21
    $region20: #{tpu_custom_call.1} parent=1 // pred_region
      %56 = vst [vmem:[#allocation2] sm:$0xff] 0.0
    $region21: #{tpu_custom_call.1} parent=1 // pred_fallthru
      _
    %v57 = vld [vmem:[#allocation3] sm:$0xff]
    %v58 = vld [vmem:[#allocation3 + $0x8] sm:$0xff]
    %v59 = vld [vmem:[#allocation6] sm:$0xff]
    %v60 = vld [vmem:[#allocation6 + $0x8] sm:$0xff]
    %v61 = vadd.f32 %v57, 1.0
    %v62 = vadd.f32 %v58, 1.0
    %v63 = vlog2.pop %v61
    %v64 = vmul.f32 %v63, 0.6931472
    %v65 = vlog2.pop %v62
    %v66 = vmul.f32 %v65, 0.6931472
    %v67 = vadd.f32 %v59, 1.0
    %v68 = vadd.f32 %v60, 1.0
    %v69 = vlog2.pop %v67
    %v70 = vmul.f32 %v69, 0.6931472
    %v71 = vlog2.pop %v68
    %v72 = vmul.f32 %v71, 0.6931472
    %v73 = vsub.f32 %v64, %v70
    %v74 = vsub.f32 %v66, %v72
    %v75 = vmul.f32 %v73, %v73
    %v76 = vmul.f32 %v74, %v74
    %v77 = vld [vmem:[#allocation2] sm:$0xff]
    %v78 = vadd.f32 %v75, %v76
    %v79 = vadd.f32 %v77, %v78
    %80 = vst [vmem:[#allocation2] sm:$0xff] %v79
    // Predicated region
    $region22: #{tpu_custom_call.1} parent=1 // pred_check
      %p81 = pneg %p52
    $region23: #{tpu_custom_call.1} parent=1 // pred_check_branch
      %83 = sbr.rel (%p81) target = $region25
    $region24: #{tpu_custom_call.1} parent=1 // pred_region
      %v84 = vld [vmem:[#allocation2] sm:$0xff]
      %85 = vadd.xlane.f32.xlu0 %v84
      %v86 = vpop.xlane.xlu0 %85
      %v87 = vrot.slane %v86, 4
      %v88 = vadd.f32 %v86, %v87
      %v89 = vrot.slane %v88, 2
      %v90 = vadd.f32 %v88, %v89
      %v91 = vrot.slane %v90, 1
      %v92 = vadd.f32 %v90, %v91
      %s93 = vtos %v92
      %s94 = smul.f32 %s93, 0.00048828125
      %s95 = scalar_lea.smem [#allocation8], 0
      %96 = sst [smem:[%s95]] %s94
    $region25: #{tpu_custom_call.1} parent=1 // pred_fallthru
      _
    // Predicated region
    $region26: #{tpu_custom_call.1} parent=1 // pred_check
      _
    $region27: #{tpu_custom_call.1} parent=1 // pred_check_branch
      %98 = sbr.rel (0) target = $region29
    $region28: #{tpu_custom_call.1} parent=1 // pred_region
      %s100 = ssub.s32 16, 16
      %101 = vsyncadd [#allocation5], %s100
      %104 = dma.smem_to_hbm [#allocation8], 16, %s2, [#allocation5]
    $region29: #{tpu_custom_call.1} parent=1 // pred_fallthru
      _
    // Predicated region
    $region30: #{tpu_custom_call.1} parent=1 // pred_check
      _
    $region31: #{tpu_custom_call.1} parent=1 // pred_check_branch
      %106 = sbr.rel (0) target = $region33
    $region32: #{tpu_custom_call.1} parent=1 // pred_region
      %107 = dma.done [#allocation5], 16
    $region33: #{tpu_custom_call.1} parent=1 // pred_fallthru
      _
    %108 = sfence
    %109 = vsyncpa [#allocation4], 1
    %110 = vsyncpa [#allocation7], 1
    %111 = vsyncpa [#allocation5], 1

</llo_original>
